<compile_context>
chip_gen: v6e
topology: v6e:2x2x1
jax: 0.10.0
libtpu: 0.0.40
codegen_flags: <defaults>
</compile_context>

<pallas_src>
import functools

import jax
import jax.numpy as jnp
from jax.experimental import pallas as pl
from jax.experimental.pallas import tpu as pltpu


def _mlp_kernel(uidx_ref, iidx_ref, a_ref, b_ref, w2_ref, w3_ref, w4_ref, o_ref):
    """Fused (gather + W1) + MLP tail, feature-major (batch on lanes).

    a_ref : (H1, K)        bf16  W1 folded into the stacked [user|item] tables.
    b_ref : (H1+H2+H3, 1)  f32   stacked biases b1;b2;b3.
    w2_ref: (H2, H1) bf16, w3_ref: (H3, H2) bf16, w4_ref: (H3, 1) f32.
    uidx/iidx: (1, blk) int32; item indices are pre-offset by the padded
    user-vocab width so one stacked one-hot covers both gathers.
    """
    blk = o_ref.shape[1]
    k_tot = a_ref.shape[1]
    h1 = w2_ref.shape[1]
    h2 = w2_ref.shape[0]
    h3 = w3_ref.shape[0]

    uidx = uidx_ref[...]                       # (1, blk) int32
    iidx = iidx_ref[...]                       # (1, blk) int32 (offset by NUp)

    # One stacked one-hot (two 1s per column) -> single K=k_tot MXU gather
    # that simultaneously applies W1:  h = W1 @ [user_emb[u]; item_emb[i]].
    rows = jax.lax.broadcasted_iota(jnp.int32, (k_tot, blk), 0)
    onehot = jnp.logical_or(rows == uidx, rows == iidx).astype(jnp.bfloat16)

    h = jnp.dot(a_ref[...], onehot, preferred_element_type=jnp.float32)  # (H1,blk)
    h = jnp.maximum(h + b_ref[0:h1, :], 0.0)

    h = jnp.dot(w2_ref[...], h.astype(jnp.bfloat16),
                preferred_element_type=jnp.float32) + b_ref[h1:h1 + h2, :]
    h = jnp.maximum(h, 0.0)

    h = jnp.dot(w3_ref[...], h.astype(jnp.bfloat16),
                preferred_element_type=jnp.float32) + b_ref[h1 + h2:h1 + h2 + h3, :]
    h = jnp.maximum(h, 0.0)

    # Final 1-wide layer off the MXU: broadcast-mul + sublane reduce (VPU/XLU).
    z = jnp.sum(w4_ref[...] * h, axis=0, keepdims=True)         # (1, blk)
    o_ref[...] = jax.nn.sigmoid(z).astype(o_ref.dtype)          # lane-dense store


def _pad_lanes(a, mult=128):
    """Zero-pad the last (lane) dim up to a multiple of `mult`."""
    pad = (-a.shape[-1]) % mult
    if pad:
        a = jnp.pad(a, ((0, 0), (0, pad)))
    return a


def _round_up(x, m):
    return ((x + m - 1) // m) * m


@functools.partial(jax.jit, static_argnames=("block_b",))
def mlp_forward(user, item, params, *, block_b=1024):
    """Replicates MLP.forward(user, item); user/item are int32 [B, 1]."""
    (user_emb_tbl, item_emb_tbl, w1, b1, w2, b2, w3, b3, w4) = params

    B = user.shape[0]
    E = user_emb_tbl.shape[1]

    # --- param prep (cheap XLA ops; in production cache the folded tables) ---
    a_u = _pad_lanes(w1[:, :E] @ user_emb_tbl.T)        # (H1, NUp)
    a_i = _pad_lanes(w1[:, E:] @ item_emb_tbl.T)        # (H1, NIp)
    nu_pad = a_u.shape[1]
    a_tbl = jnp.concatenate([a_u, a_i], axis=1).astype(jnp.bfloat16)

    b_stack = jnp.concatenate([b1, b2, b3], axis=0)      # (H1+H2+H3, 1) f32
    w2_b = w2.astype(jnp.bfloat16)
    w3_b = w3.astype(jnp.bfloat16)

    # --- batch tiling: big tiles, but keep >= 2 grid steps (v7x dual-TC) -----
    max_blk = _round_up(-(-B // 2), 128)                 # cdiv(B,2) rounded up
    block_b = max(128, min(block_b, max_blk))
    assert block_b % 128 == 0
    num_tiles = pl.cdiv(B, block_b)
    b_pad = num_tiles * block_b

    def prep_idx(idx, offset=0):
        flat = idx.reshape(-1).astype(jnp.int32) + offset
        flat = jnp.pad(flat, (0, b_pad - B), constant_values=offset)
        return flat.reshape(1, b_pad)

    uidx = prep_idx(user)
    iidx = prep_idx(item, nu_pad)        # item rows live after the user rows

    full = lambda i: (0, 0)              # constant index_map -> resident operand

    out = pl.pallas_call(
        _mlp_kernel,
        out_shape=jax.ShapeDtypeStruct((1, b_pad), jnp.float32),
        grid_spec=pltpu.PrefetchScalarGridSpec(
            num_scalar_prefetch=0,
            grid=(num_tiles,),
            in_specs=[
                pl.BlockSpec((1, block_b), lambda i: (0, i)),   # user idx tile
                pl.BlockSpec((1, block_b), lambda i: (0, i)),   # item idx tile
                pl.BlockSpec(a_tbl.shape, full),                # folded tables
                pl.BlockSpec(b_stack.shape, full),              # stacked biases
                pl.BlockSpec(w2_b.shape, full),                 # W2 (32, 64)
                pl.BlockSpec(w3_b.shape, full),                 # W3 (16, 32)
                pl.BlockSpec(w4.shape, full),                   # W4 (16, 1)
            ],
            out_specs=pl.BlockSpec((1, block_b), lambda i: (0, i)),
        ),
        compiler_params=pltpu.CompilerParams(
            dimension_semantics=("parallel",)),
    )(uidx, iidx, a_tbl, b_stack, w2_b, w3_b, w4)

    return out[0, :B].reshape(B, 1)


def init_params(key, num_users=100, num_items=80, embeddings=64):
    """Synthetic parameters matching the module's shapes.

    nn.Embedding -> N(0,1); nn.Linear -> U(-1/sqrt(fan_in), 1/sqrt(fan_in)).
    Linear weights kept in PyTorch [out, in] layout; biases as [out, 1]; the
    bias-free final layer stored as a [16, 1] column.
    """
    ks = jax.random.split(key, 10)

    user_emb = jax.random.normal(ks[0], (num_users, embeddings), jnp.float32)
    item_emb = jax.random.normal(ks[1], (num_items, embeddings), jnp.float32)

    def linear(kw, kb, fan_in, fan_out, bias=True):
        bound = 1.0 / (fan_in ** 0.5)
        w = jax.random.uniform(kw, (fan_out, fan_in), jnp.float32, -bound, bound)
        b = (jax.random.uniform(kb, (fan_out, 1), jnp.float32, -bound, bound)
             if bias else None)
        return w, b

    w1, b1 = linear(ks[2], ks[3], embeddings * 2, 64)
    w2, b2 = linear(ks[4], ks[5], 64, 32)
    w3, b3 = linear(ks[6], ks[7], 32, 16)
    w4, _ = linear(ks[8], ks[9], 16, 1, bias=False)
    w4 = w4.T                                   # (16, 1) column

    return (user_emb, item_emb, w1, b1, w2, b2, w3, b3, w4)


def reference_forward(user, item, params):
    """Pure-JAX f32 reference for correctness checking."""
    ue, ie, w1, b1, w2, b2, w3, b3, w4 = params
    e1 = ue[user[:, 0]]
    e2 = ie[item[:, 0]]
    h = jnp.concatenate([e1, e2], axis=1)
    h = jax.nn.relu(h @ w1.T + b1.T)
    h = jax.nn.relu(h @ w2.T + b2.T)
    h = jax.nn.relu(h @ w3.T + b3.T)
    return jax.nn.sigmoid(h @ w4)


if __name__ == "__main__":
    num_users, num_items, embeddings, batch = 100, 80, 64, 200

    k_params, k_u, k_i = jax.random.split(jax.random.PRNGKey(0), 3)
    params = init_params(k_params, num_users, num_items, embeddings)

    user = jax.random.randint(k_u, (batch, 1), 0, num_users, dtype=jnp.int32)
    item = jax.random.randint(k_i, (batch, 1), 0, num_items, dtype=jnp.int32)

    # Default block_b=1024 is clamped to 128 here -> a 2-step parallel grid
    # (both TCs busy on v7x) and exercises the ragged-tail padding (200 -> 256).
    out = mlp_forward(user, item, params)
    out = jax.block_until_ready(out)

    ref = reference_forward(user, item, params)
    assert out.shape == (batch, 1)
    err = float(jnp.max(jnp.abs(out - ref)))
    # bf16 gather/hidden matmuls (f32 accumulation) -> loosened tolerance.
    assert err < 2e-2, f"mismatch vs reference: max abs err = {err}"

    print("KERNEL_OK")
</pallas_src>

<mosaic_0001>
module attributes {stable_mosaic.version = 11 : i64} {
  func.func @_mlp_kernel(%arg0: i32, %arg1: memref<1x128xi32, #tpu.memory_space<vmem>>, %arg2: memref<1x128xi32, #tpu.memory_space<vmem>>, %arg3: memref<64x256xbf16, #tpu.memory_space<vmem>>, %arg4: memref<112x1xf32, #tpu.memory_space<vmem>>, %arg5: memref<32x64xbf16, #tpu.memory_space<vmem>>, %arg6: memref<16x32xbf16, #tpu.memory_space<vmem>>, %arg7: memref<16x1xf32, #tpu.memory_space<vmem>>, %arg8: memref<1x128xf32, #tpu.memory_space<vmem>>) attributes {dimension_semantics = [#tpu.dimension_semantics<parallel>], iteration_bounds = array<i64: 2>, scalar_prefetch = 0 : i64, scratch_operands = 0 : i64, tpu.core_type = #tpu.core_type<tc>, window_params = [{transform_indices = @transform_0, window_bounds = array<i64: 1, 128>}, {transform_indices = @transform_1, window_bounds = array<i64: 1, 128>}, {pipeline_mode = #tpu.pipeline_mode<synchronous>, transform_indices = @transform_2, window_bounds = array<i64: 64, 256>}, {pipeline_mode = #tpu.pipeline_mode<synchronous>, transform_indices = @transform_3, window_bounds = array<i64: 112, 1>}, {pipeline_mode = #tpu.pipeline_mode<synchronous>, transform_indices = @transform_4, window_bounds = array<i64: 32, 64>}, {pipeline_mode = #tpu.pipeline_mode<synchronous>, transform_indices = @transform_5, window_bounds = array<i64: 16, 32>}, {pipeline_mode = #tpu.pipeline_mode<synchronous>, transform_indices = @transform_6, window_bounds = array<i64: 16, 1>}, {transform_indices = @transform_7, window_bounds = array<i64: 1, 128>}]} {
    %c0 = arith.constant 0 : index
    %c0_0 = arith.constant 0 : index
    %0 = vector.load %arg1[%c0, %c0_0] : memref<1x128xi32, #tpu.memory_space<vmem>>, vector<1x128xi32>
    %c0_1 = arith.constant 0 : index
    %c0_2 = arith.constant 0 : index
    %1 = vector.load %arg2[%c0_1, %c0_2] : memref<1x128xi32, #tpu.memory_space<vmem>>, vector<1x128xi32>
    %2 = tpu.iota {dimensions = array<i32: 0>} : vector<256x128xi32>
    %3 = vector.broadcast %0 : vector<1x128xi32> to vector<256x128xi32>
    %4 = arith.cmpi eq, %2, %3 : vector<256x128xi32>
    %5 = vector.broadcast %1 : vector<1x128xi32> to vector<256x128xi32>
    %6 = arith.cmpi eq, %2, %5 : vector<256x128xi32>
    %7 = arith.ori %4, %6 : vector<256x128xi1>
    %8 = arith.extui %7 : vector<256x128xi1> to vector<256x128xi32>
    %9 = arith.sitofp %8 : vector<256x128xi32> to vector<256x128xf32>
    %10 = arith.truncf %9 : vector<256x128xf32> to vector<256x128xbf16>
    %c0_3 = arith.constant 0 : index
    %c0_4 = arith.constant 0 : index
    %11 = vector.load %arg3[%c0_3, %c0_4] : memref<64x256xbf16, #tpu.memory_space<vmem>>, vector<64x256xbf16>
    %cst = arith.constant dense<0.000000e+00> : vector<64x128xf32>
    %12 = tpu.matmul %11, %10, %cst {dimension_numbers = #tpu.dot_dimension_numbers<[1], [0], [0], [1], [0, 0, 1, 1], [], []>} : vector<64x256xbf16>, vector<256x128xbf16>, vector<64x128xf32> -> vector<64x128xf32>
    %c0_5 = arith.constant 0 : index
    %c0_6 = arith.constant 0 : index
    %13 = vector.load %arg4[%c0_5, %c0_6] : memref<112x1xf32, #tpu.memory_space<vmem>>, vector<64x1xf32>
    %14 = vector.broadcast %13 : vector<64x1xf32> to vector<64x128xf32>
    %15 = arith.addf %12, %14 : vector<64x128xf32>
    %cst_7 = arith.constant 0.000000e+00 : f32
    %16 = vector.broadcast %cst_7 : f32 to vector<64x128xf32>
    %17 = arith.maximumf %15, %16 : vector<64x128xf32>
    %c0_8 = arith.constant 0 : index
    %c0_9 = arith.constant 0 : index
    %18 = vector.load %arg5[%c0_8, %c0_9] : memref<32x64xbf16, #tpu.memory_space<vmem>>, vector<32x64xbf16>
    %19 = arith.truncf %17 : vector<64x128xf32> to vector<64x128xbf16>
    %cst_10 = arith.constant dense<0.000000e+00> : vector<32x128xf32>
    %20 = tpu.matmul %18, %19, %cst_10 {dimension_numbers = #tpu.dot_dimension_numbers<[1], [0], [0], [1], [0, 0, 1, 1], [], []>} : vector<32x64xbf16>, vector<64x128xbf16>, vector<32x128xf32> -> vector<32x128xf32>
    %c64 = arith.constant 64 : index
    %c0_11 = arith.constant 0 : index
    %21 = vector.load %arg4[%c64, %c0_11] : memref<112x1xf32, #tpu.memory_space<vmem>>, vector<32x1xf32>
    %22 = vector.broadcast %21 : vector<32x1xf32> to vector<32x128xf32>
    %23 = arith.addf %20, %22 : vector<32x128xf32>
    %cst_12 = arith.constant 0.000000e+00 : f32
    %24 = vector.broadcast %cst_12 : f32 to vector<32x128xf32>
    %25 = arith.maximumf %23, %24 : vector<32x128xf32>
    %c0_13 = arith.constant 0 : index
    %c0_14 = arith.constant 0 : index
    %26 = vector.load %arg6[%c0_13, %c0_14] : memref<16x32xbf16, #tpu.memory_space<vmem>>, vector<16x32xbf16>
    %27 = arith.truncf %25 : vector<32x128xf32> to vector<32x128xbf16>
    %cst_15 = arith.constant dense<0.000000e+00> : vector<16x128xf32>
    %28 = tpu.matmul %26, %27, %cst_15 {dimension_numbers = #tpu.dot_dimension_numbers<[1], [0], [0], [1], [0, 0, 1, 1], [], []>} : vector<16x32xbf16>, vector<32x128xbf16>, vector<16x128xf32> -> vector<16x128xf32>
    %c96 = arith.constant 96 : index
    %c0_16 = arith.constant 0 : index
    %29 = vector.load %arg4[%c96, %c0_16] : memref<112x1xf32, #tpu.memory_space<vmem>>, vector<16x1xf32>
    %30 = vector.broadcast %29 : vector<16x1xf32> to vector<16x128xf32>
    %31 = arith.addf %28, %30 : vector<16x128xf32>
    %cst_17 = arith.constant 0.000000e+00 : f32
    %32 = vector.broadcast %cst_17 : f32 to vector<16x128xf32>
    %33 = arith.maximumf %31, %32 : vector<16x128xf32>
    %c0_18 = arith.constant 0 : index
    %c0_19 = arith.constant 0 : index
    %34 = vector.load %arg7[%c0_18, %c0_19] : memref<16x1xf32, #tpu.memory_space<vmem>>, vector<16x1xf32>
    %35 = vector.broadcast %34 : vector<16x1xf32> to vector<16x128xf32>
    %36 = arith.mulf %35, %33 : vector<16x128xf32>
    %cst_20 = arith.constant dense<0.000000e+00> : vector<128xf32>
    %37 = vector.multi_reduction <add>, %36, %cst_20 [0] : vector<16x128xf32> to vector<128xf32>
    %38 = vector.shape_cast %37 : vector<128xf32> to vector<1x128xf32>
    %39 = arith.negf %38 : vector<1x128xf32>
    %40 = math.exp %39 : vector<1x128xf32>
    %cst_21 = arith.constant 1.000000e+00 : f32
    %41 = vector.broadcast %cst_21 : f32 to vector<1x128xf32>
    %42 = arith.addf %41, %40 : vector<1x128xf32>
    %43 = arith.divf %41, %42 : vector<1x128xf32>
    %c0_22 = arith.constant 0 : index
    %c0_23 = arith.constant 0 : index
    %44 = vector.load %arg8[%c0_22, %c0_23] : memref<1x128xf32, #tpu.memory_space<vmem>>, vector<1x128xf32>
    tpu.vector_store %arg8[%c0_22, %c0_23], %43 {strides = array<i32>} : memref<1x128xf32, #tpu.memory_space<vmem>>, vector<1x128xf32>,
    return
  }
  func.func @transform_0(%arg0: i32) -> (i32, i32) {
    %c0_i32 = arith.constant 0 : i32
    %c0_i32_0 = arith.constant 0 : i32
    return %c0_i32, %arg0 : i32, i32
  }
  func.func @transform_1(%arg0: i32) -> (i32, i32) {
    %c0_i32 = arith.constant 0 : i32
    %c0_i32_0 = arith.constant 0 : i32
    return %c0_i32, %arg0 : i32, i32
  }
  func.func @transform_2(%arg0: i32) -> (i32, i32) {
    %c0_i32 = arith.constant 0 : i32
    %c0_i32_0 = arith.constant 0 : i32
    %c0_i32_1 = arith.constant 0 : i32
    return %c0_i32, %c0_i32_0 : i32, i32
  }
  func.func @transform_3(%arg0: i32) -> (i32, i32) {
    %c0_i32 = arith.constant 0 : i32
    %c0_i32_0 = arith.constant 0 : i32
    %c0_i32_1 = arith.constant 0 : i32
    return %c0_i32, %c0_i32_0 : i32, i32
  }
  func.func @transform_4(%arg0: i32) -> (i32, i32) {
    %c0_i32 = arith.constant 0 : i32
    %c0_i32_0 = arith.constant 0 : i32
    %c0_i32_1 = arith.constant 0 : i32
    return %c0_i32, %c0_i32_0 : i32, i32
  }
  func.func @transform_5(%arg0: i32) -> (i32, i32) {
    %c0_i32 = arith.constant 0 : i32
    %c0_i32_0 = arith.constant 0 : i32
    %c0_i32_1 = arith.constant 0 : i32
    return %c0_i32, %c0_i32_0 : i32, i32
  }
  func.func @transform_6(%arg0: i32) -> (i32, i32) {
    %c0_i32 = arith.constant 0 : i32
    %c0_i32_0 = arith.constant 0 : i32
    %c0_i32_1 = arith.constant 0 : i32
    return %c0_i32, %c0_i32_0 : i32, i32
  }
  func.func @transform_7(%arg0: i32) -> (i32, i32) {
    %c0_i32 = arith.constant 0 : i32
    %c0_i32_0 = arith.constant 0 : i32
    return %c0_i32, %arg0 : i32, i32
  }
}

</mosaic_0001>

<llo_original>
// kernel: mlp_forward.1
$region0: #{mlp_forward.1}
  #allocation0 [shape = 'u32[]', space=smem, size = 0x4, offset = 0x4, fixed_abs, tag = 'smem constant byte address 0x4 - core index']
  #allocation1 [shape = 'u32[144,128]{1,0:T(1,128)}', space=vmem, size = 0x12000, scoped, tag = 'internal scratch']
  %s0 = inlined_call_operand.vmem [shape: s32[1,256], index: 0, kind: input, shape index: {}]
  %s1 = inlined_call_operand.vmem [shape: s32[1,256], index: 1, kind: input, shape index: {}]
  %s2 = inlined_call_operand.vmem [shape: bf16[64,256], index: 2, kind: input, shape index: {}]
  %s3 = inlined_call_operand.vmem [shape: f32[112,1], index: 3, kind: input, shape index: {}]
  %s4 = inlined_call_operand.vmem [shape: bf16[32,64], index: 4, kind: input, shape index: {}]
  %s5 = inlined_call_operand.vmem [shape: bf16[16,32], index: 5, kind: input, shape index: {}]
  %s6 = inlined_call_operand.vmem [shape: f32[16,1], index: 6, kind: input, shape index: {}]
  %s7 = inlined_call_operand.vmem [shape: f32[1,256], index: 7, kind: output, shape index: {}]
  %s8 = sld [smem:[#allocation0]]
  $region61: #{mlp_forward.1} parent=0
    _
  %s10 = ssub.s32 1, %s8
  %s11 = scalar_select 0, %s10, %s8
  loop: start=0, step=1, limit=4
  $region2: #{mlp_forward.1} parent=0 // loop_pre_header
    _
  $region3: #{mlp_forward.1} parent=0 // loop_header
    %s13 = sphi 0, %s17
    %p14 = scmp.ge.s32.totalorder %s13, 4
    %s23 = sphi 0, %s25
    %s26 = sphi 0, %s23
    %s27 = sphi 0, %s26
    %s43 = sphi 0, %s27
    %s49 = sphi 0, %s51
    %s52 = sphi 0, %s49
    %s53 = sphi 0, %s52
    %s69 = sphi 0, %s53
    %s73 = sphi 0, %s73
    %s75 = sphi 0, %s73
    %s76 = sphi 0, %s75
    %s90 = sphi 0, %s76
    %s94 = sphi 0, %s94
    %s96 = sphi 0, %s94
    %s97 = sphi 0, %s96
    %s111 = sphi 0, %s97
    %s115 = sphi 0, %s115
    %s117 = sphi 0, %s115
    %s118 = sphi 0, %s117
    %s132 = sphi 0, %s118
    %s136 = sphi 0, %s136
    %s138 = sphi 0, %s136
    %s139 = sphi 0, %s138
    %s153 = sphi 0, %s139
    %s157 = sphi 0, %s157
    %s159 = sphi 0, %s157
    %s160 = sphi 0, %s159
    %s174 = sphi 0, %s160
    %s180 = sphi 0, %s182
    %s183 = sphi 0, %s180
    %s184 = sphi 0, %s183
    %s200 = sphi 0, %s184
  $region4: #{mlp_forward.1} parent=0 // loop_header_branch
    %16 = sbr.rel (%p14) target = $region8
  $region5: #{mlp_forward.1} parent=0 // loop_body
    %s18 = ssub.s32 %s13, 1
    %s19 = ssub.s32 %s13, 2
    %s20 = sadd.s32 %s13, 1
    %s21 = ssub.s32 %s13, %s20
    %p22 = scmp.eq.s32.totalorder %s21, 0
    %s24 = sadd.s32 %s23, 1
    %s25 = scalar_select %p22, %s23, %s24
    %p28 = pneg %p22
    %p29 = scmp.eq.s32.totalorder %s13, 1
    %p30 = por %p28, %p29
    %p31 = scmp.ne.s32.totalorder %s23, %s26
    %p32 = scmp.eq.s32.totalorder %s13, 0
    %p33 = por %p31, %p32
    %p34 = scmp.ne.s32.totalorder %s23, %s26
    %p35 = scmp.eq.s32.totalorder %s18, 1
    %p36 = por %p34, %p35
    %p37 = scmp.ne.s32.totalorder %s26, %s27
    %p38 = scmp.eq.s32.totalorder %s18, 0
    %p39 = por %p37, %p38
    %p40 = scmp.ne.s32.totalorder %s26, %s27
    %p41 = scmp.eq.s32.totalorder %s19, 1
    %p42 = por %p40, %p41
    %p44 = scmp.ne.s32.totalorder %s27, %s43
    %p45 = scmp.eq.s32.totalorder %s19, 0
    %p46 = por %p44, %p45
    %s47 = ssub.s32 %s13, %s20
    %p48 = scmp.eq.s32.totalorder %s47, 0
    %s50 = sadd.s32 %s49, 1
    %s51 = scalar_select %p48, %s49, %s50
    %p54 = pneg %p48
    %p55 = scmp.eq.s32.totalorder %s13, 1
    %p56 = por %p54, %p55
    %p57 = scmp.ne.s32.totalorder %s49, %s52
    %p58 = scmp.eq.s32.totalorder %s13, 0
    %p59 = por %p57, %p58
    %p60 = scmp.ne.s32.totalorder %s49, %s52
    %p61 = scmp.eq.s32.totalorder %s18, 1
    %p62 = por %p60, %p61
    %p63 = scmp.ne.s32.totalorder %s52, %s53
    %p64 = scmp.eq.s32.totalorder %s18, 0
    %p65 = por %p63, %p64
    %p66 = scmp.ne.s32.totalorder %s52, %s53
    %p67 = scmp.eq.s32.totalorder %s19, 1
    %p68 = por %p66, %p67
    %p70 = scmp.ne.s32.totalorder %s53, %s69
    %p71 = scmp.eq.s32.totalorder %s19, 0
    %p72 = por %p70, %p71
    %s74 = sadd.s32 %s73, 1
    %p77 = scmp.eq.s32.totalorder %s13, 1
    %p78 = scmp.ne.s32.totalorder %s73, %s75
    %p79 = scmp.eq.s32.totalorder %s13, 0
    %p80 = por %p78, %p79
    %p81 = scmp.ne.s32.totalorder %s73, %s75
    %p82 = scmp.eq.s32.totalorder %s18, 1
    %p83 = por %p81, %p82
    %p84 = scmp.ne.s32.totalorder %s75, %s76
    %p85 = scmp.eq.s32.totalorder %s18, 0
    %p86 = por %p84, %p85
    %p87 = scmp.ne.s32.totalorder %s75, %s76
    %p88 = scmp.eq.s32.totalorder %s19, 1
    %p89 = por %p87, %p88
    %p91 = scmp.ne.s32.totalorder %s76, %s90
    %p92 = scmp.eq.s32.totalorder %s19, 0
    %p93 = por %p91, %p92
    %s95 = sadd.s32 %s94, 1
    %p98 = scmp.eq.s32.totalorder %s13, 1
    %p99 = scmp.ne.s32.totalorder %s94, %s96
    %p100 = scmp.eq.s32.totalorder %s13, 0
    %p101 = por %p99, %p100
    %p102 = scmp.ne.s32.totalorder %s94, %s96
    %p103 = scmp.eq.s32.totalorder %s18, 1
    %p104 = por %p102, %p103
    %p105 = scmp.ne.s32.totalorder %s96, %s97
    %p106 = scmp.eq.s32.totalorder %s18, 0
    %p107 = por %p105, %p106
    %p108 = scmp.ne.s32.totalorder %s96, %s97
    %p109 = scmp.eq.s32.totalorder %s19, 1
    %p110 = por %p108, %p109
    %p112 = scmp.ne.s32.totalorder %s97, %s111
    %p113 = scmp.eq.s32.totalorder %s19, 0
    %p114 = por %p112, %p113
    %s116 = sadd.s32 %s115, 1
    %p119 = scmp.eq.s32.totalorder %s13, 1
    %p120 = scmp.ne.s32.totalorder %s115, %s117
    %p121 = scmp.eq.s32.totalorder %s13, 0
    %p122 = por %p120, %p121
    %p123 = scmp.ne.s32.totalorder %s115, %s117
    %p124 = scmp.eq.s32.totalorder %s18, 1
    %p125 = por %p123, %p124
    %p126 = scmp.ne.s32.totalorder %s117, %s118
    %p127 = scmp.eq.s32.totalorder %s18, 0
    %p128 = por %p126, %p127
    %p129 = scmp.ne.s32.totalorder %s117, %s118
    %p130 = scmp.eq.s32.totalorder %s19, 1
    %p131 = por %p129, %p130
    %p133 = scmp.ne.s32.totalorder %s118, %s132
    %p134 = scmp.eq.s32.totalorder %s19, 0
    %p135 = por %p133, %p134
    %s137 = sadd.s32 %s136, 1
    %p140 = scmp.eq.s32.totalorder %s13, 1
    %p141 = scmp.ne.s32.totalorder %s136, %s138
    %p142 = scmp.eq.s32.totalorder %s13, 0
    %p143 = por %p141, %p142
    %p144 = scmp.ne.s32.totalorder %s136, %s138
    %p145 = scmp.eq.s32.totalorder %s18, 1
    %p146 = por %p144, %p145
    %p147 = scmp.ne.s32.totalorder %s138, %s139
    %p148 = scmp.eq.s32.totalorder %s18, 0
    %p149 = por %p147, %p148
    %p150 = scmp.ne.s32.totalorder %s138, %s139
    %p151 = scmp.eq.s32.totalorder %s19, 1
    %p152 = por %p150, %p151
    %p154 = scmp.ne.s32.totalorder %s139, %s153
    %p155 = scmp.eq.s32.totalorder %s19, 0
    %p156 = por %p154, %p155
    %s158 = sadd.s32 %s157, 1
    %p161 = scmp.eq.s32.totalorder %s13, 1
    %p162 = scmp.ne.s32.totalorder %s157, %s159
    %p163 = scmp.eq.s32.totalorder %s13, 0
    %p164 = por %p162, %p163
    %p165 = scmp.ne.s32.totalorder %s157, %s159
    %p166 = scmp.eq.s32.totalorder %s18, 1
    %p167 = por %p165, %p166
    %p168 = scmp.ne.s32.totalorder %s159, %s160
    %p169 = scmp.eq.s32.totalorder %s18, 0
    %p170 = por %p168, %p169
    %p171 = scmp.ne.s32.totalorder %s159, %s160
    %p172 = scmp.eq.s32.totalorder %s19, 1
    %p173 = por %p171, %p172
    %p175 = scmp.ne.s32.totalorder %s160, %s174
    %p176 = scmp.eq.s32.totalorder %s19, 0
    %p177 = por %p175, %p176
    %s178 = ssub.s32 %s13, %s20
    %p179 = scmp.eq.s32.totalorder %s178, 0
    %s181 = sadd.s32 %s180, 1
    %s182 = scalar_select %p179, %s180, %s181
    %p185 = pneg %p179
    %p186 = scmp.eq.s32.totalorder %s13, 1
    %p187 = por %p185, %p186
    %p188 = scmp.ne.s32.totalorder %s180, %s183
    %p189 = scmp.eq.s32.totalorder %s13, 0
    %p190 = por %p188, %p189
    %p191 = scmp.ne.s32.totalorder %s180, %s183
    %p192 = scmp.eq.s32.totalorder %s18, 1
    %p193 = por %p191, %p192
    %p194 = scmp.ne.s32.totalorder %s183, %s184
    %p195 = scmp.eq.s32.totalorder %s18, 0
    %p196 = por %p194, %p195
    %p197 = scmp.ne.s32.totalorder %s183, %s184
    %p198 = scmp.eq.s32.totalorder %s19, 1
    %p199 = por %p197, %p198
    %p201 = scmp.ne.s32.totalorder %s184, %s200
    %p202 = scmp.eq.s32.totalorder %s19, 0
    %p203 = por %p201, %p202
    %p204 = scmp.le.s32.totalorder 1, %s13
    %p205 = scmp.lt.s32.totalorder %s13, 3
    %p206 = pnand %p204, %p205
    %p207 = pneg %p206
    // Predicated region
    $region9: #{mlp_forward.1} parent=5 // pred_check
      _
    $region10: #{mlp_forward.1} parent=5 // pred_check_branch
      %209 = sbr.rel (%p206) target = $region12
    $region11: #{mlp_forward.1} parent=5 // pred_region
      %s210 = ssub.s32 %s13, 1
      // Predicated region
      $region13: #{mlp_forward.1} parent=11 // pred_check
        %p211 = pneg %p86
      $region14: #{mlp_forward.1} parent=11 // pred_check_branch
        %213 = sbr.rel (%p211) target = $region16
      $region15: #{mlp_forward.1} parent=11 // pred_region
        _
      $region16: #{mlp_forward.1} parent=11 // pred_fallthru
        _
      // Predicated region
      $region17: #{mlp_forward.1} parent=11 // pred_check
        %p214 = pneg %p107
      $region18: #{mlp_forward.1} parent=11 // pred_check_branch
        %216 = sbr.rel (%p214) target = $region20
      $region19: #{mlp_forward.1} parent=11 // pred_region
        _
      $region20: #{mlp_forward.1} parent=11 // pred_fallthru
        _
      // Predicated region
      $region21: #{mlp_forward.1} parent=11 // pred_check
        %p217 = pneg %p128
      $region22: #{mlp_forward.1} parent=11 // pred_check_branch
        %219 = sbr.rel (%p217) target = $region24
      $region23: #{mlp_forward.1} parent=11 // pred_region
        _
      $region24: #{mlp_forward.1} parent=11 // pred_fallthru
        _
      // Predicated region
      $region25: #{mlp_forward.1} parent=11 // pred_check
        %p220 = pneg %p149
      $region26: #{mlp_forward.1} parent=11 // pred_check_branch
        %222 = sbr.rel (%p220) target = $region28
      $region27: #{mlp_forward.1} parent=11 // pred_region
        _
      $region28: #{mlp_forward.1} parent=11 // pred_fallthru
        _
      // Predicated region
      $region29: #{mlp_forward.1} parent=11 // pred_check
        %p223 = pneg %p170
      $region30: #{mlp_forward.1} parent=11 // pred_check_branch
        %225 = sbr.rel (%p223) target = $region32
      $region31: #{mlp_forward.1} parent=11 // pred_region
        _
      $region32: #{mlp_forward.1} parent=11 // pred_fallthru
        _
    $region12: #{mlp_forward.1} parent=5 // pred_fallthru
      _
    %p226 = scmp.lt.s32.totalorder %s13, 2
    // Predicated region
    $region33: #{mlp_forward.1} parent=5 // pred_check
      %p227 = pneg %p226
    $region34: #{mlp_forward.1} parent=5 // pred_check_branch
      %229 = sbr.rel (%p227) target = $region36
    $region35: #{mlp_forward.1} parent=5 // pred_region
      // Predicated region
      $region37: #{mlp_forward.1} parent=35 // pred_check
        %p230 = pneg %p33
      $region38: #{mlp_forward.1} parent=35 // pred_check_branch
        %232 = sbr.rel (%p230) target = $region40
      $region39: #{mlp_forward.1} parent=35 // pred_region
        %p233 = scmp.lt.s32.totalorder %s13, 1
        %s234 = scalar_select %p233, %s13, 1
        %s235 = scalar_lea.vmem %s0, %s234
      $region40: #{mlp_forward.1} parent=35 // pred_fallthru
        _
      // Predicated region
      $region41: #{mlp_forward.1} parent=35 // pred_check
        %p236 = pneg %p59
      $region42: #{mlp_forward.1} parent=35 // pred_check_branch
        %238 = sbr.rel (%p236) target = $region44
      $region43: #{mlp_forward.1} parent=35 // pred_region
        %p239 = scmp.lt.s32.totalorder %s13, 1
        %s240 = scalar_select %p239, %s13, 1
        %s241 = scalar_lea.vmem %s1, %s240
      $region44: #{mlp_forward.1} parent=35 // pred_fallthru
        _
    $region36: #{mlp_forward.1} parent=5 // pred_fallthru
      _
    %p242 = scmp.le.s32.totalorder 1, %s13
    %p243 = scmp.lt.s32.totalorder %s13, 3
    %p244 = pnand %p242, %p243
    %p245 = pneg %p244
    // Predicated region
    $region45: #{mlp_forward.1} parent=5 // pred_check
      _
    $region46: #{mlp_forward.1} parent=5 // pred_check_branch
      %247 = sbr.rel (%p244) target = $region48
    $region47: #{mlp_forward.1} parent=5 // pred_region
      %s248 = ssub.s32 %s13, 1
      %p249 = scmp.lt.s32.totalorder %s18, 1
      %s250 = scalar_select %p249, %s18, 1
      %s251 = scalar_lea.vmem %s0, %s250
      %p252 = pneg %p39
      %p253 = pneg %p36
      %p254 = scmp.lt.s32.totalorder %s18, 1
      %s255 = scalar_select %p254, %s18, 1
      %s256 = scalar_lea.vmem %s1, %s255
      %p257 = pneg %p65
      %p258 = pneg %p62
      %p259 = pneg %p86
      %p260 = pneg %p83
      %p261 = pneg %p107
      %p262 = pneg %p104
      %p263 = pneg %p128
      %p264 = pneg %p125
      %p265 = pneg %p149
      %p266 = pneg %p146
      %p267 = pneg %p170
      %p268 = pneg %p167
      %p269 = pneg %p196
      %p270 = pneg %p193
      %p271 = scmp.lt.s32.totalorder %s18, 1
      %s272 = scalar_select %p271, %s18, 1
      %s273 = scalar_lea.vmem %s7, %s272
      %p274 = scmp.lt.s32.totalorder %s18, 1
      %s275 = scalar_select %p274, %s18, 1
      %s276 = scalar_lea.vmem %s0, %s275
      %p277 = scmp.lt.s32.totalorder %s18, 1
      %s278 = scalar_select %p277, %s18, 1
      %s279 = scalar_lea.vmem %s1, %s278
      %p280 = scmp.lt.s32.totalorder %s18, 1
      %s281 = scalar_select %p280, %s18, 1
      %s282 = scalar_lea.vmem %s7, %s281
      %v284 = vld [vmem:[%s276] sm:$0x1]
      %v285 = vld [vmem:[%s279] sm:$0x1]
      %v286 = vlaneseq
      %v287 = vshrl.u32 %v286, 7
      %v288 = vadd.s32 %v287, 8
      %v289 = vadd.s32 %v287, 16
      %v290 = vadd.s32 %v287, 24
      %v291 = vadd.s32 %v287, 32
      %v292 = vadd.s32 %v287, 40
      %v293 = vadd.s32 %v287, 48
      %v294 = vadd.s32 %v287, 56
      %v295 = vadd.s32 %v287, 64
      %v296 = vadd.s32 %v287, 72
      %v297 = vadd.s32 %v287, 80
      %v298 = vadd.s32 %v287, 88
      %v299 = vadd.s32 %v287, 96
      %v300 = vadd.s32 %v287, 104
      %v301 = vadd.s32 %v287, 112
      %v302 = vadd.s32 %v287, 120
      %v303 = vadd.s32 %v287, 128
      %v304 = vadd.s32 %v287, 136
      %v305 = vadd.s32 %v287, 144
      %v306 = vadd.s32 %v287, 152
      %v307 = vadd.s32 %v287, 160
      %v308 = vadd.s32 %v287, 168
      %v309 = vadd.s32 %v287, 176
      %v310 = vadd.s32 %v287, 184
      %v311 = vadd.s32 %v287, 192
      %v312 = vadd.s32 %v287, 200
      %v313 = vadd.s32 %v287, 208
      %v314 = vadd.s32 %v287, 216
      %v315 = vadd.s32 %v287, 224
      %v316 = vadd.s32 %v287, 232
      %v317 = vadd.s32 %v287, 240
      %v318 = vadd.s32 %v287, 248
      %v319 = vlaneseq
      %v320 = vshrl.u32 %v319, 7
      %v321 = vsub.s32 0, %v320
      %v322 = vrot.slane %v284, %v321
      %vm323 = vcmp.eq.s32.totalorder %v287, %v322
      %vm324 = vcmp.eq.s32.totalorder %v288, %v322
      %vm325 = vcmp.eq.s32.totalorder %v289, %v322
      %vm326 = vcmp.eq.s32.totalorder %v290, %v322
      %vm327 = vcmp.eq.s32.totalorder %v291, %v322
      %vm328 = vcmp.eq.s32.totalorder %v292, %v322
      %vm329 = vcmp.eq.s32.totalorder %v293, %v322
      %vm330 = vcmp.eq.s32.totalorder %v294, %v322
      %vm331 = vcmp.eq.s32.totalorder %v295, %v322
      %vm332 = vcmp.eq.s32.totalorder %v296, %v322
      %vm333 = vcmp.eq.s32.totalorder %v297, %v322
      %vm334 = vcmp.eq.s32.totalorder %v298, %v322
      %vm335 = vcmp.eq.s32.totalorder %v299, %v322
      %vm336 = vcmp.eq.s32.totalorder %v300, %v322
      %vm337 = vcmp.eq.s32.totalorder %v301, %v322
      %vm338 = vcmp.eq.s32.totalorder %v302, %v322
      %vm339 = vcmp.eq.s32.totalorder %v303, %v322
      %vm340 = vcmp.eq.s32.totalorder %v304, %v322
      %vm341 = vcmp.eq.s32.totalorder %v305, %v322
      %vm342 = vcmp.eq.s32.totalorder %v306, %v322
      %vm343 = vcmp.eq.s32.totalorder %v307, %v322
      %vm344 = vcmp.eq.s32.totalorder %v308, %v322
      %vm345 = vcmp.eq.s32.totalorder %v309, %v322
      %vm346 = vcmp.eq.s32.totalorder %v310, %v322
      %vm347 = vcmp.eq.s32.totalorder %v311, %v322
      %vm348 = vcmp.eq.s32.totalorder %v312, %v322
      %vm349 = vcmp.eq.s32.totalorder %v313, %v322
      %vm350 = vcmp.eq.s32.totalorder %v314, %v322
      %vm351 = vcmp.eq.s32.totalorder %v315, %v322
      %vm352 = vcmp.eq.s32.totalorder %v316, %v322
      %vm353 = vcmp.eq.s32.totalorder %v317, %v322
      %vm354 = vcmp.eq.s32.totalorder %v318, %v322
      %v355 = vlaneseq
      %v356 = vshrl.u32 %v355, 7
      %v357 = vsub.s32 0, %v356
      %v358 = vrot.slane %v285, %v357
      %vm359 = vcmp.eq.s32.totalorder %v287, %v358
      %vm360 = vcmp.eq.s32.totalorder %v288, %v358
      %vm361 = vcmp.eq.s32.totalorder %v289, %v358
      %vm362 = vcmp.eq.s32.totalorder %v290, %v358
      %vm363 = vcmp.eq.s32.totalorder %v291, %v358
      %vm364 = vcmp.eq.s32.totalorder %v292, %v358
      %vm365 = vcmp.eq.s32.totalorder %v293, %v358
      %vm366 = vcmp.eq.s32.totalorder %v294, %v358
      %vm367 = vcmp.eq.s32.totalorder %v295, %v358
      %vm368 = vcmp.eq.s32.totalorder %v296, %v358
      %vm369 = vcmp.eq.s32.totalorder %v297, %v358
      %vm370 = vcmp.eq.s32.totalorder %v298, %v358
      %vm371 = vcmp.eq.s32.totalorder %v299, %v358
      %vm372 = vcmp.eq.s32.totalorder %v300, %v358
      %vm373 = vcmp.eq.s32.totalorder %v301, %v358
      %vm374 = vcmp.eq.s32.totalorder %v302, %v358
      %vm375 = vcmp.eq.s32.totalorder %v303, %v358
      %vm376 = vcmp.eq.s32.totalorder %v304, %v358
      %vm377 = vcmp.eq.s32.totalorder %v305, %v358
      %vm378 = vcmp.eq.s32.totalorder %v306, %v358
      %vm379 = vcmp.eq.s32.totalorder %v307, %v358
      %vm380 = vcmp.eq.s32.totalorder %v308, %v358
      %vm381 = vcmp.eq.s32.totalorder %v309, %v358
      %vm382 = vcmp.eq.s32.totalorder %v310, %v358
      %vm383 = vcmp.eq.s32.totalorder %v311, %v358
      %vm384 = vcmp.eq.s32.totalorder %v312, %v358
      %vm385 = vcmp.eq.s32.totalorder %v313, %v358
      %vm386 = vcmp.eq.s32.totalorder %v314, %v358
      %vm387 = vcmp.eq.s32.totalorder %v315, %v358
      %vm388 = vcmp.eq.s32.totalorder %v316, %v358
      %vm389 = vcmp.eq.s32.totalorder %v317, %v358
      %vm390 = vcmp.eq.s32.totalorder %v318, %v358
      %vm391 = vmor %vm323, %vm359
      %vm392 = vmor %vm324, %vm360
      %vm393 = vmor %vm325, %vm361
      %vm394 = vmor %vm326, %vm362
      %vm395 = vmor %vm327, %vm363
      %vm396 = vmor %vm328, %vm364
      %vm397 = vmor %vm329, %vm365
      %vm398 = vmor %vm330, %vm366
      %vm399 = vmor %vm331, %vm367
      %vm400 = vmor %vm332, %vm368
      %vm401 = vmor %vm333, %vm369
      %vm402 = vmor %vm334, %vm370
      %vm403 = vmor %vm335, %vm371
      %vm404 = vmor %vm336, %vm372
      %vm405 = vmor %vm337, %vm373
      %vm406 = vmor %vm338, %vm374
      %vm407 = vmor %vm339, %vm375
      %vm408 = vmor %vm340, %vm376
      %vm409 = vmor %vm341, %vm377
      %vm410 = vmor %vm342, %vm378
      %vm411 = vmor %vm343, %vm379
      %vm412 = vmor %vm344, %vm380
      %vm413 = vmor %vm345, %vm381
      %vm414 = vmor %vm346, %vm382
      %vm415 = vmor %vm347, %vm383
      %vm416 = vmor %vm348, %vm384
      %vm417 = vmor %vm349, %vm385
      %vm418 = vmor %vm350, %vm386
      %vm419 = vmor %vm351, %vm387
      %vm420 = vmor %vm352, %vm388
      %vm421 = vmor %vm353, %vm389
      %vm422 = vmor %vm354, %vm390
      %v423 = vsel %vm391, 1, 0
      %v424 = vsel %vm392, 1, 0
      %v425 = vsel %vm393, 1, 0
      %v426 = vsel %vm394, 1, 0
      %v427 = vsel %vm395, 1, 0
      %v428 = vsel %vm396, 1, 0
      %v429 = vsel %vm397, 1, 0
      %v430 = vsel %vm398, 1, 0
      %v431 = vsel %vm399, 1, 0
      %v432 = vsel %vm400, 1, 0
      %v433 = vsel %vm401, 1, 0
      %v434 = vsel %vm402, 1, 0
      %v435 = vsel %vm403, 1, 0
      %v436 = vsel %vm404, 1, 0
      %v437 = vsel %vm405, 1, 0
      %v438 = vsel %vm406, 1, 0
      %v439 = vsel %vm407, 1, 0
      %v440 = vsel %vm408, 1, 0
      %v441 = vsel %vm409, 1, 0
      %v442 = vsel %vm410, 1, 0
      %v443 = vsel %vm411, 1, 0
      %v444 = vsel %vm412, 1, 0
      %v445 = vsel %vm413, 1, 0
      %v446 = vsel %vm414, 1, 0
      %v447 = vsel %vm415, 1, 0
      %v448 = vsel %vm416, 1, 0
      %v449 = vsel %vm417, 1, 0
      %v450 = vsel %vm418, 1, 0
      %v451 = vsel %vm419, 1, 0
      %v452 = vsel %vm420, 1, 0
      %v453 = vsel %vm421, 1, 0
      %v454 = vsel %vm422, 1, 0
      %v455 = vcvt.s32.f32 %v423
      %v456 = vcvt.s32.f32 %v424
      %v457 = vcvt.s32.f32 %v425
      %v458 = vcvt.s32.f32 %v426
      %v459 = vcvt.s32.f32 %v427
      %v460 = vcvt.s32.f32 %v428
      %v461 = vcvt.s32.f32 %v429
      %v462 = vcvt.s32.f32 %v430
      %v463 = vcvt.s32.f32 %v431
      %v464 = vcvt.s32.f32 %v432
      %v465 = vcvt.s32.f32 %v433
      %v466 = vcvt.s32.f32 %v434
      %v467 = vcvt.s32.f32 %v435
      %v468 = vcvt.s32.f32 %v436
      %v469 = vcvt.s32.f32 %v437
      %v470 = vcvt.s32.f32 %v438
      %v471 = vcvt.s32.f32 %v439
      %v472 = vcvt.s32.f32 %v440
      %v473 = vcvt.s32.f32 %v441
      %v474 = vcvt.s32.f32 %v442
      %v475 = vcvt.s32.f32 %v443
      %v476 = vcvt.s32.f32 %v444
      %v477 = vcvt.s32.f32 %v445
      %v478 = vcvt.s32.f32 %v446
      %v479 = vcvt.s32.f32 %v447
      %v480 = vcvt.s32.f32 %v448
      %v481 = vcvt.s32.f32 %v449
      %v482 = vcvt.s32.f32 %v450
      %v483 = vcvt.s32.f32 %v451
      %v484 = vcvt.s32.f32 %v452
      %v485 = vcvt.s32.f32 %v453
      %v486 = vcvt.s32.f32 %v454
      %v487 = vpack.c.bf16 %v456, %v455
      %v488 = vpack.c.bf16 %v458, %v457
      %v489 = vpack.c.bf16 %v460, %v459
      %v490 = vpack.c.bf16 %v462, %v461
      %v491 = vpack.c.bf16 %v464, %v463
      %v492 = vpack.c.bf16 %v466, %v465
      %v493 = vpack.c.bf16 %v468, %v467
      %v494 = vpack.c.bf16 %v470, %v469
      %v495 = vpack.c.bf16 %v472, %v471
      %v496 = vpack.c.bf16 %v474, %v473
      %v497 = vpack.c.bf16 %v476, %v475
      %v498 = vpack.c.bf16 %v478, %v477
      %v499 = vpack.c.bf16 %v480, %v479
      %v500 = vpack.c.bf16 %v482, %v481
      %v501 = vpack.c.bf16 %v484, %v483
      %v502 = vpack.c.bf16 %v486, %v485
      %v503 = vld [vmem:[%s2] sm:$0xff]
      %v504 = vld [vmem:[%s2 + $0x8] sm:$0xff]
      %v505 = vld [vmem:[%s2 + $0x10] sm:$0xff]
      %v506 = vld [vmem:[%s2 + $0x18] sm:$0xff]
      %v507 = vld [vmem:[%s2 + $0x20] sm:$0xff]
      %v508 = vld [vmem:[%s2 + $0x28] sm:$0xff]
      %v509 = vld [vmem:[%s2 + $0x30] sm:$0xff]
      %v510 = vld [vmem:[%s2 + $0x38] sm:$0xff]
      %v511 = vld [vmem:[%s3] sm:$0xff]
      %v512 = vld [vmem:[%s3 + $0x8] sm:$0xff]
      %v513 = vld [vmem:[%s3 + $0x10] sm:$0xff]
      %v514 = vld [vmem:[%s3 + $0x18] sm:$0xff]
      %v515 = vld [vmem:[%s3 + $0x20] sm:$0xff]
      %v516 = vld [vmem:[%s3 + $0x28] sm:$0xff]
      %v517 = vld [vmem:[%s3 + $0x30] sm:$0xff]
      %v518 = vld [vmem:[%s3 + $0x38] sm:$0xff]
      %520 = vset.pattern.permute.xlu0 0
      %521 = vperm.xlu0 %520, %v511
      %v522 = vpop.permute.xlu0 %521
      %525 = vset.pattern.permute.xlu0 0
      %526 = vperm.xlu0 %525, %v512
      %v527 = vpop.permute.xlu0 %526
      %530 = vset.pattern.permute.xlu0 0
      %531 = vperm.xlu0 %530, %v513
      %v532 = vpop.permute.xlu0 %531
      %535 = vset.pattern.permute.xlu0 0
      %536 = vperm.xlu0 %535, %v514
      %v537 = vpop.permute.xlu0 %536
      %540 = vset.pattern.permute.xlu0 0
      %541 = vperm.xlu0 %540, %v515
      %v542 = vpop.permute.xlu0 %541
      %545 = vset.pattern.permute.xlu0 0
      %546 = vperm.xlu0 %545, %v516
      %v547 = vpop.permute.xlu0 %546
      %550 = vset.pattern.permute.xlu0 0
      %551 = vperm.xlu0 %550, %v517
      %v552 = vpop.permute.xlu0 %551
      %555 = vset.pattern.permute.xlu0 0
      %556 = vperm.xlu0 %555, %v518
      %v557 = vpop.permute.xlu0 %556
      %v567 = vunpack.c.l.b16 %v503
      %v568 = vunpack.c.h.b16 %v503
      %v569 = vunpack.c.l.b16 %v504
      %v570 = vunpack.c.h.b16 %v504
      %v571 = vunpack.c.l.b16 %v505
      %v572 = vunpack.c.h.b16 %v505
      %v573 = vunpack.c.l.b16 %v506
      %v574 = vunpack.c.h.b16 %v506
      %v575 = vunpack.c.l.b16 %v507
      %v576 = vunpack.c.h.b16 %v507
      %v577 = vunpack.c.l.b16 %v508
      %v578 = vunpack.c.h.b16 %v508
      %v579 = vunpack.c.l.b16 %v509
      %v580 = vunpack.c.h.b16 %v509
      %v581 = vunpack.c.l.b16 %v510
      %v582 = vunpack.c.h.b16 %v510
      %v583 = vpack.c.b16 %v569, %v567
      %v584 = vpack.c.b16 %v570, %v568
      %v585 = vpack.c.b16 %v573, %v571
      %v586 = vpack.c.b16 %v574, %v572
      %v587 = vpack.c.b16 %v577, %v575
      %v588 = vpack.c.b16 %v578, %v576
      %v589 = vpack.c.b16 %v581, %v579
      %v590 = vpack.c.b16 %v582, %v580
      %599 = vmatprep.subr.bf16.mxu0 0
      %600 = vmatpush1.bf16.msra.mxu0 %v494
      %601 = vmatprep.subr.bf16.mxu0 0
      %602 = vmatpush1.bf16.msra.mxu0 %v493
      %603 = vmatprep.subr.bf16.mxu0 0
      %604 = vmatpush1.bf16.msra.mxu0 %v492
      %605 = vmatprep.subr.bf16.mxu0 0
      %606 = vmatpush1.bf16.msra.mxu0 %v491
      %607 = vmatprep.subr.bf16.mxu0 0
      %608 = vmatpush1.bf16.msra.mxu0 %v490
      %609 = vmatprep.subr.bf16.mxu0 0
      %610 = vmatpush1.bf16.msra.mxu0 %v489
      %611 = vmatprep.subr.bf16.mxu0 0
      %612 = vmatpush1.bf16.msra.mxu0 %v488
      %613 = vmatprep.subr.bf16.mxu0 0
      %614 = vmatpush1.bf16.msra.mxu0 %v487
      %615 = vmatprep.subr.bf16.mxu0 0
      %616 = vmatpush2.bf16.msra.mxu0 %v502
      %617 = vmatprep.subr.bf16.mxu0 0
      %618 = vmatpush2.bf16.msra.mxu0 %v501
      %619 = vmatprep.subr.bf16.mxu0 0
      %620 = vmatpush2.bf16.msra.mxu0 %v500
      %621 = vmatprep.subr.bf16.mxu0 0
      %622 = vmatpush2.bf16.msra.mxu0 %v499
      %623 = vmatprep.subr.bf16.mxu0 0
      %624 = vmatpush2.bf16.msra.mxu0 %v498
      %625 = vmatprep.subr.bf16.mxu0 0
      %626 = vmatpush2.bf16.msra.mxu0 %v497
      %627 = vmatprep.subr.bf16.mxu0 0
      %628 = vmatpush2.bf16.msra.mxu0 %v496
      %629 = vmatprep.subr.bf16.mxu0 0
      %630 = vmatpush2.bf16.msra.mxu0 %v495
      %631 = vmatprep.mubr.bf16.mxu0 %v584
      %632 = vmatmul.mubr.bf16.gmra.mxu0 %v583
      %v633 = vpop.f32.mrf.mxu0
      %v634 = vadd.f32 %v522, %v633
      %v635 = vpop.f32.mrf.mxu0
      %v636 = vpop.f32.mrf.mxu0
      %v637 = vadd.f32 %v527, %v636
      %v638 = vpop.f32.mrf.mxu0
      %639 = vmatprep.mubr.bf16.mxu0 %v586
      %640 = vmatmul.mubr.bf16.gmra.mxu0 %v585
      %v641 = vpop.f32.mrf.mxu0
      %v642 = vadd.f32 %v532, %v641
      %v643 = vpop.f32.mrf.mxu0
      %v644 = vpop.f32.mrf.mxu0
      %v645 = vadd.f32 %v537, %v644
      %v646 = vpop.f32.mrf.mxu0
      %647 = vmatprep.mubr.bf16.mxu0 %v588
      %648 = vmatmul.mubr.bf16.gmra.mxu0 %v587
      %v649 = vpop.f32.mrf.mxu0
      %v650 = vadd.f32 %v542, %v649
      %v651 = vpop.f32.mrf.mxu0
      %v652 = vpop.f32.mrf.mxu0
      %v653 = vadd.f32 %v547, %v652
      %v654 = vpop.f32.mrf.mxu0
      %655 = vmatprep.mubr.bf16.mxu0 %v590
      %656 = vmatmul.mubr.bf16.gmra.mxu0 %v589
      %v657 = vpop.f32.mrf.mxu0
      %v658 = vadd.f32 %v552, %v657
      %v659 = vpop.f32.mrf.mxu0
      %v660 = vpop.f32.mrf.mxu0
      %v661 = vadd.f32 %v557, %v660
      %v662 = vpop.f32.mrf.mxu0
      %663 = vdwg.mxu0
      %v664 = vmax.f32 %v634, 0.0
      %v665 = vmax.f32 %v637, 0.0
      %v666 = vmax.f32 %v642, 0.0
      %v667 = vmax.f32 %v645, 0.0
      %v668 = vmax.f32 %v650, 0.0
      %v669 = vmax.f32 %v653, 0.0
      %v670 = vmax.f32 %v658, 0.0
      %v671 = vmax.f32 %v661, 0.0
      %v672 = vld [vmem:[%s4] sm:$0xf]
      %v673 = vld [vmem:[%s4 + $0x4] sm:$0xf]
      %v674 = vld [vmem:[%s4 + $0x8] sm:$0xf]
      %v675 = vld [vmem:[%s4 + $0xc] sm:$0xf]
      %v676 = vpack.c.bf16 %v665, %v664
      %v677 = vpack.c.bf16 %v667, %v666
      %v678 = vpack.c.bf16 %v669, %v668
      %v679 = vpack.c.bf16 %v671, %v670
      %v680 = vld [vmem:[%s3 + $0x40] sm:$0xff]
      %v681 = vld [vmem:[%s3 + $0x48] sm:$0xff]
      %v682 = vld [vmem:[%s3 + $0x50] sm:$0xff]
      %v683 = vld [vmem:[%s3 + $0x58] sm:$0xff]
      %685 = vset.pattern.permute.xlu0 0
      %686 = vperm.xlu0 %685, %v680
      %v687 = vpop.permute.xlu0 %686
      %690 = vset.pattern.permute.xlu0 0
      %691 = vperm.xlu0 %690, %v681
      %v692 = vpop.permute.xlu0 %691
      %695 = vset.pattern.permute.xlu0 0
      %696 = vperm.xlu0 %695, %v682
      %v697 = vpop.permute.xlu0 %696
      %700 = vset.pattern.permute.xlu0 0
      %701 = vperm.xlu0 %700, %v683
      %v702 = vpop.permute.xlu0 %701
      %v708 = vunpack.c.l.b16 %v672
      %v709 = vunpack.c.l.b16 %v673
      %v710 = vunpack.c.l.b16 %v674
      %v711 = vunpack.c.l.b16 %v675
      %v712 = vpack.c.b16 %v709, %v708
      %v713 = vpack.c.b16 %v711, %v710
      %vm714 = vcmask 523264
      %v716 = vsel %vm714, %v712, 0
      %v719 = vsel %vm714, %v713, 0
      %721 = vmatprep.subr.bf16.mxu0 0
      %722 = vmatpush1.bf16.msra.mxu0 0
      %723 = vmatprep.subr.bf16.mxu0 0
      %724 = vmatpush1.bf16.msra.mxu0 0
      %725 = vmatprep.subr.bf16.mxu0 0
      %726 = vmatpush1.bf16.msra.mxu0 0
      %727 = vmatprep.subr.bf16.mxu0 0
      %728 = vmatpush1.bf16.msra.mxu0 0
      %729 = vmatprep.subr.bf16.mxu0 0
      %730 = vmatpush1.bf16.msra.mxu0 %v679
      %731 = vmatprep.subr.bf16.mxu0 0
      %732 = vmatpush1.bf16.msra.mxu0 %v678
      %733 = vmatprep.subr.bf16.mxu0 0
      %734 = vmatpush1.bf16.msra.mxu0 %v677
      %735 = vmatprep.subr.bf16.mxu0 0
      %736 = vmatpush1.bf16.msra.mxu0 %v676
      %737 = vmatprep.subr.bf16.mxu0 0
      %738 = vmatpush2.bf16.msra.mxu0 0
      %739 = vmatprep.subr.bf16.mxu0 0
      %740 = vmatpush2.bf16.msra.mxu0 0
      %741 = vmatprep.subr.bf16.mxu0 0
      %742 = vmatpush2.bf16.msra.mxu0 0
      %743 = vmatprep.subr.bf16.mxu0 0
      %744 = vmatpush2.bf16.msra.mxu0 0
      %745 = vmatprep.subr.bf16.mxu0 0
      %746 = vmatpush2.bf16.msra.mxu0 0
      %747 = vmatprep.subr.bf16.mxu0 0
      %748 = vmatpush2.bf16.msra.mxu0 0
      %749 = vmatprep.subr.bf16.mxu0 0
      %750 = vmatpush2.bf16.msra.mxu0 0
      %751 = vmatprep.subr.bf16.mxu0 0
      %752 = vmatpush2.bf16.msra.mxu0 0
      %753 = vmatprep.mubr.bf16.mxu0 0
      %754 = vmatmul.mubr.bf16.gmra.mxu0 %v716
      %v755 = vpop.f32.mrf.mxu0
      %v756 = vadd.f32 %v687, %v755
      %v757 = vpop.f32.mrf.mxu0
      %v758 = vpop.f32.mrf.mxu0
      %v759 = vadd.f32 %v692, %v758
      %v760 = vpop.f32.mrf.mxu0
      %761 = vmatprep.mubr.bf16.mxu0 0
      %762 = vmatmul.mubr.bf16.gmra.mxu0 %v719
      %v763 = vpop.f32.mrf.mxu0
      %v764 = vadd.f32 %v697, %v763
      %v765 = vpop.f32.mrf.mxu0
      %v766 = vpop.f32.mrf.mxu0
      %v767 = vadd.f32 %v702, %v766
      %v768 = vpop.f32.mrf.mxu0
      %769 = vdwg.mxu0
      %v770 = vmax.f32 %v756, 0.0
      %v771 = vmax.f32 %v759, 0.0
      %v772 = vmax.f32 %v764, 0.0
      %v773 = vmax.f32 %v767, 0.0
      %v774 = vld [vmem:[%s5] sm:$0xf]
      %v775 = vld [vmem:[%s5 + $0x4] sm:$0xf]
      %v776 = vpack.c.bf16 %v771, %v770
      %v777 = vpack.c.bf16 %v773, %v772
      %v778 = vld [vmem:[%s3 + $0x60] sm:$0xff]
      %v779 = vld [vmem:[%s3 + $0x68] sm:$0xff]
      %781 = vset.pattern.permute.xlu0 0
      %782 = vperm.xlu0 %781, %v778
      %v783 = vpop.permute.xlu0 %782
      %786 = vset.pattern.permute.xlu0 0
      %787 = vperm.xlu0 %786, %v779
      %v788 = vpop.permute.xlu0 %787
      %v792 = vunpack.c.l.b16 %v774
      %v793 = vunpack.c.l.b16 %v775
      %v794 = vpack.c.b16 %v793, %v792
      %vm795 = vcmask 261120
      %v797 = vsel %vm795, %v794, 0
      %799 = vmatprep.subr.bf16.mxu0 0
      %800 = vmatpush1.bf16.msra.mxu0 0
      %801 = vmatprep.subr.bf16.mxu0 0
      %802 = vmatpush1.bf16.msra.mxu0 0
      %803 = vmatprep.subr.bf16.mxu0 0
      %804 = vmatpush1.bf16.msra.mxu0 0
      %805 = vmatprep.subr.bf16.mxu0 0
      %806 = vmatpush1.bf16.msra.mxu0 0
      %807 = vmatprep.subr.bf16.mxu0 0
      %808 = vmatpush1.bf16.msra.mxu0 0
      %809 = vmatprep.subr.bf16.mxu0 0
      %810 = vmatpush1.bf16.msra.mxu0 0
      %811 = vmatprep.subr.bf16.mxu0 0
      %812 = vmatpush1.bf16.msra.mxu0 %v777
      %813 = vmatprep.subr.bf16.mxu0 0
      %814 = vmatpush1.bf16.msra.mxu0 %v776
      %815 = vmatprep.subr.bf16.mxu0 0
      %816 = vmatpush2.bf16.msra.mxu0 0
      %817 = vmatprep.subr.bf16.mxu0 0
      %818 = vmatpush2.bf16.msra.mxu0 0
      %819 = vmatprep.subr.bf16.mxu0 0
      %820 = vmatpush2.bf16.msra.mxu0 0
      %821 = vmatprep.subr.bf16.mxu0 0
      %822 = vmatpush2.bf16.msra.mxu0 0
      %823 = vmatprep.subr.bf16.mxu0 0
      %824 = vmatpush2.bf16.msra.mxu0 0
      %825 = vmatprep.subr.bf16.mxu0 0
      %826 = vmatpush2.bf16.msra.mxu0 0
      %827 = vmatprep.subr.bf16.mxu0 0
      %828 = vmatpush2.bf16.msra.mxu0 0
      %829 = vmatprep.subr.bf16.mxu0 0
      %830 = vmatpush2.bf16.msra.mxu0 0
      %831 = vmatprep.mubr.bf16.mxu0 0
      %832 = vmatmul.mubr.bf16.gmra.mxu0 %v797
      %v833 = vpop.f32.mrf.mxu0
      %v834 = vadd.f32 %v783, %v833
      %v835 = vpop.f32.mrf.mxu0
      %v836 = vpop.f32.mrf.mxu0
      %v837 = vadd.f32 %v788, %v836
      %v838 = vpop.f32.mrf.mxu0
      %839 = vdwg.mxu0
      %v840 = vmax.f32 %v834, 0.0
      %v841 = vmax.f32 %v837, 0.0
      %v842 = vld [vmem:[%s6] sm:$0xff]
      %v843 = vld [vmem:[%s6 + $0x8] sm:$0xff]
      %845 = vset.pattern.permute.xlu0 0
      %846 = vperm.xlu0 %845, %v842
      %v847 = vpop.permute.xlu0 %846
      %850 = vset.pattern.permute.xlu0 0
      %851 = vperm.xlu0 %850, %v843
      %v852 = vpop.permute.xlu0 %851
      %v854 = vmul.f32 %v847, %v840
      %v855 = vmul.f32 %v852, %v841
      %v856 = vadd.f32 %v854, %v855
      %v857 = vrot.slane %v856, 4
      %v858 = vadd.f32 %v856, %v857
      %v859 = vrot.slane %v858, 2
      %v860 = vadd.f32 %v858, %v859
      %v861 = vrot.slane %v860, 1
      %v862 = vadd.f32 %v860, %v861
      %v863 = vxor.u32 %v862, 2147483648
      %v864 = vmul.f32 %v863, 1.442695
      %v865 = vpow.pop %v864
      %v866 = vadd.f32 %v865, 1.0
      %v867 = vrcp.pop %v866
      %v868 = vmul.f32 1.0, %v867
      %869 = vst [vmem:[%s282] sm:$0x1] %v868
      %p870 = scmp.lt.s32.totalorder %s18, 1
      %s871 = scalar_select %p870, %s18, 1
      %s872 = scalar_lea.vmem %s7, %s871
      // Predicated region
      $region49: #{mlp_forward.1} parent=47 // pred_check
        %p873 = pneg %p193
      $region50: #{mlp_forward.1} parent=47 // pred_check_branch
        %875 = sbr.rel (%p873) target = $region52
      $region51: #{mlp_forward.1} parent=47 // pred_region
        _
      $region52: #{mlp_forward.1} parent=47 // pred_fallthru
        _
    $region48: #{mlp_forward.1} parent=5 // pred_fallthru
      _
    %p876 = scmp.le.s32.totalorder 2, %s13
    // Predicated region
    $region53: #{mlp_forward.1} parent=5 // pred_check
      %p877 = pneg %p876
    $region54: #{mlp_forward.1} parent=5 // pred_check_branch
      %879 = sbr.rel (%p877) target = $region56
    $region55: #{mlp_forward.1} parent=5 // pred_region
      %s880 = ssub.s32 %s13, 2
      // Predicated region
      $region57: #{mlp_forward.1} parent=55 // pred_check
        %p881 = pneg %p199
      $region58: #{mlp_forward.1} parent=55 // pred_check_branch
        %883 = sbr.rel (%p881) target = $region60
      $region59: #{mlp_forward.1} parent=55 // pred_region
        %p884 = scmp.lt.s32.totalorder %s19, 1
        %s885 = scalar_select %p884, %s19, 1
        %s886 = scalar_lea.vmem %s7, %s885
      $region60: #{mlp_forward.1} parent=55 // pred_fallthru
        _
    $region56: #{mlp_forward.1} parent=5 // pred_fallthru
      _
  $region6: #{mlp_forward.1} parent=0 // loop_footer
    %s17 = sadd.s32 1, %s13
  $region7: #{mlp_forward.1} parent=0 // loop_footer_branch
    %12 = sbr.rel target = $region3
  $region8: #{mlp_forward.1} parent=0 // loop_exit
    _

</llo_original>
